<compile_context>
chip_gen: v6e
topology: v6e:2x2x1
jax: 0.10.0
libtpu: 0.0.40
codegen_flags: <defaults>
</compile_context>

<pallas_src>
import jax
import jax.numpy as jnp
from jax.experimental import pallas as pl
from jax.experimental.pallas import tpu as pltpu

N_BITS = 32
N_PAD = 128            # lane-dense output width (unmasked vst, full MXU columns)
MAX_TILE_B = 2048      # 2048*1024*4B = 8 MiB/input block; 16 MiB double-buffered
                       # + 0.5 MiB weight + 2 MiB output buffers < 32 MiB scoped VMEM.
MIN_SPLIT_TILE_B = 512 # don't shrink tiles below this just to create grid steps.


def _choose_tile_b(batch):
    """Pick the batch tile: big for DMA amortization, >=2 steps for v7x megacore."""
    if batch > MAX_TILE_B:
        return MAX_TILE_B                          # multiple of 8; ragged edge OK
    if batch >= 2 * MIN_SPLIT_TILE_B:
        # Split into >=2 grid steps so v7x's two TensorCores both get work,
        # rounded to a sublane multiple so block shapes stay (8,128)-aligned.
        half = -(-batch // 2)
        return min(MAX_TILE_B, ((half + 7) // 8) * 8)
    return batch                                   # single full-extent block


def _decode_kernel(x_ref, w_ref, bits_ref):
    """Preprocess one batch tile and decode synthetic watermark bits per image.

    x_ref    : (TILE_B, C*H*W) float32, values nominally in [-1, 1]
    w_ref    : (C*H*W, 128)    bfloat16 fused synthetic decoder weight (cols 32..127 zero)
    bits_ref : (TILE_B, 128)   float32 output bits for this tile (cols 32..127 unused)
    """
    x = x_ref[...]

    # --- faithful preprocessing from the PyTorch forward -----------------------
    # (x + 1)/2 * 255 + 0.5  ==  x * 127.5 + 128.0   (single fused affine op)
    # Full clamp to [0, 255] kept for semantic fidelity (adversarial inputs may
    # leave [-1, 1]); floor emulates the .to(torch.uint8) truncation.
    t = x * 127.5 + 128.0
    t = jnp.clip(t, 0.0, 255.0)
    # q is an exact integer in [0, 255] -> the bf16 cast is lossless and lets the
    # matmul take the single-pass bf16 MXU path.
    q = jnp.floor(t).astype(jnp.bfloat16)

    # --- synthetic stand-in for watermark_decoder.decode(...) ------------------
    # TODO(synk): the real module calls an external watermark decoder returning a
    # str/bytes payload converted to bits on the host (bytearray_to_bits, try/except,
    # .numpy()); no Pallas equivalent, replaced by a deterministic fused linear
    # decoder + sign threshold.
    logits = jnp.dot(q, w_ref[...], preferred_element_type=jnp.float32)  # (TILE_B, 128)

    bits_ref[...] = (logits > 0.0).astype(jnp.float32)


def watermark_decoder_forward(xr, w1, w2):
    """xr: (B, C, H, W) float32 in [-1, 1]  ->  (B, 32) float32 bits.

    w1: (W, 32), w2: (1, C*H) -- the original two-stage synthetic decoder weights,
    fused here so the kernel runs a single GEMM:
        logits = w2 @ (q2d @ w1)  ==  q_flat @ W_eff,
        W_eff[r*W + w, :] = w2[0, r] * w1[w, :].
    """
    B, C, H, W = xr.shape
    K = C * H * W

    # One-time wrapper work: fuse the two matmuls, cast to bf16, pad the 32-wide
    # output dim up to 128 lanes (zero columns -> logits 0 -> bit 0, sliced off).
    w_eff = (w2[0][:, None, None] * w1[None, :, :]).reshape(K, N_BITS)
    w_eff = w_eff.astype(jnp.bfloat16)
    w_eff_pad = jnp.pad(w_eff, ((0, 0), (0, N_PAD - N_BITS)))

    # Lane-dense flat layout: last dim = C*H*W (1024 for the demo shape).
    x_flat = xr.reshape(B, K)

    tile_b = _choose_tile_b(B)
    grid = (pl.cdiv(B, tile_b),)   # no input padding; Pallas handles the ragged tail

    cost = pl.CostEstimate(
        flops=2 * B * K * N_PAD + 4 * B * K,           # GEMM + preprocessing
        transcendentals=0,
        bytes_accessed=B * K * 4 + K * N_PAD * 2 + B * N_PAD * 4,
    )

    bits_pad = pl.pallas_call(
        _decode_kernel,
        out_shape=jax.ShapeDtypeStruct((B, N_PAD), jnp.float32),
        grid=grid,
        in_specs=[
            pl.BlockSpec((tile_b, K), lambda i: (i, 0)),     # one batch tile per step
            pl.BlockSpec((K, N_PAD), lambda i: (0, 0)),      # fused weight, constant
                                                             # index map -> fetched once
        ],
        out_specs=pl.BlockSpec((tile_b, N_PAD), lambda i: (i, 0)),
        compiler_params=pltpu.CompilerParams(
            dimension_semantics=("parallel",),               # v7x: shard tiles over 2 TCs
            vmem_limit_bytes=32 << 20,                       # 2048-row tiles fit on v5e too
        ),
        cost_estimate=cost,
    )(x_flat, w_eff_pad)

    return bits_pad[:, :N_BITS]


def _reference_forward(xr, w1, w2):
    """Plain-JAX reference with identical math (for correctness check)."""
    B, C, H, W = xr.shape
    K = C * H * W
    t = jnp.clip(xr * 127.5 + 128.0, 0.0, 255.0)
    q = jnp.floor(t).reshape(B, K).astype(jnp.bfloat16)
    w_eff = (w2[0][:, None, None] * w1[None, :, :]).reshape(K, N_BITS)
    w_eff = w_eff.astype(jnp.bfloat16)
    logits = jnp.dot(q, w_eff, preferred_element_type=jnp.float32)
    return (logits > 0.0).astype(jnp.float32)


if __name__ == "__main__":
    B, C, H, W = 2, 4, 16, 16

    key = jax.random.PRNGKey(0)
    kx, kw1, kw2 = jax.random.split(key, 3)

    # input image batch in [-1, 1] (same convention the PyTorch module expects)
    xr = jax.random.uniform(kx, (B, C, H, W), jnp.float32, minval=-1.0, maxval=1.0)

    # deterministic synthetic decoder parameters
    w1 = jax.random.normal(kw1, (W, N_BITS), jnp.float32) * 0.05
    w2 = jax.random.normal(kw2, (1, C * H), jnp.float32) * 0.05

    bits = watermark_decoder_forward(xr, w1, w2)
    bits = jax.block_until_ready(bits)

    ref = jax.block_until_ready(_reference_forward(xr, w1, w2))
    assert bits.shape == (B, N_BITS) and bits.dtype == jnp.float32
    assert bool(jnp.all(bits == ref))

    print("KERNEL_OK")
</pallas_src>

<mosaic_0001>
module attributes {stable_mosaic.version = 11 : i64} {
  func.func @_decode_kernel(%arg0: i32, %arg1: memref<2x1024xf32, #tpu.memory_space<vmem>>, %arg2: memref<1024x128xbf16, #tpu.memory_space<vmem>>, %arg3: memref<2x128xf32, #tpu.memory_space<vmem>>) attributes {dimension_semantics = [#tpu.dimension_semantics<parallel>], iteration_bounds = array<i64: 1>, scalar_prefetch = 0 : i64, scratch_operands = 0 : i64, tpu.core_type = #tpu.core_type<tc>, window_params = [{transform_indices = @transform_0, window_bounds = array<i64: 2, 1024>}, {pipeline_mode = #tpu.pipeline_mode<synchronous>, transform_indices = @transform_1, window_bounds = array<i64: 1024, 128>}, {transform_indices = @transform_2, window_bounds = array<i64: 2, 128>}]} {
    %c0 = arith.constant 0 : index
    %c0_0 = arith.constant 0 : index
    %0 = vector.load %arg1[%c0, %c0_0] : memref<2x1024xf32, #tpu.memory_space<vmem>>, vector<2x1024xf32>
    %cst = arith.constant 1.275000e+02 : f32
    %1 = vector.broadcast %cst : f32 to vector<2x1024xf32>
    %2 = arith.mulf %0, %1 : vector<2x1024xf32>
    %cst_1 = arith.constant 1.280000e+02 : f32
    %3 = vector.broadcast %cst_1 : f32 to vector<2x1024xf32>
    %4 = arith.addf %2, %3 : vector<2x1024xf32>
    %cst_2 = arith.constant 0.000000e+00 : f32
    %cst_3 = arith.constant 2.550000e+02 : f32
    %5 = vector.broadcast %cst_2 : f32 to vector<2x1024xf32>
    %6 = arith.maximumf %5, %4 : vector<2x1024xf32>
    %7 = vector.broadcast %cst_3 : f32 to vector<2x1024xf32>
    %8 = arith.minimumf %7, %6 : vector<2x1024xf32>
    %9 = math.floor %8 : vector<2x1024xf32>
    %10 = arith.truncf %9 : vector<2x1024xf32> to vector<2x1024xbf16>
    %c0_4 = arith.constant 0 : index
    %c0_5 = arith.constant 0 : index
    %11 = vector.load %arg2[%c0_4, %c0_5] : memref<1024x128xbf16, #tpu.memory_space<vmem>>, vector<1024x128xbf16>
    %cst_6 = arith.constant dense<0.000000e+00> : vector<2x128xf32>
    %12 = tpu.matmul %10, %11, %cst_6 {dimension_numbers = #tpu.dot_dimension_numbers<[1], [0], [0], [1], [0, 0, 1, 1], [], []>} : vector<2x1024xbf16>, vector<1024x128xbf16>, vector<2x128xf32> -> vector<2x128xf32>
    %cst_7 = arith.constant 0.000000e+00 : f32
    %13 = vector.broadcast %cst_7 : f32 to vector<2x128xf32>
    %14 = arith.cmpf ogt, %12, %13 : vector<2x128xf32>
    %15 = arith.extui %14 : vector<2x128xi1> to vector<2x128xi32>
    %16 = arith.sitofp %15 : vector<2x128xi32> to vector<2x128xf32>
    %c0_8 = arith.constant 0 : index
    %c0_9 = arith.constant 0 : index
    %17 = vector.load %arg3[%c0_8, %c0_9] : memref<2x128xf32, #tpu.memory_space<vmem>>, vector<2x128xf32>
    tpu.vector_store %arg3[%c0_8, %c0_9], %16 {strides = array<i32>} : memref<2x128xf32, #tpu.memory_space<vmem>>, vector<2x128xf32>,
    return
  }
  func.func @transform_0(%arg0: i32) -> (i32, i32) {
    %c0_i32 = arith.constant 0 : i32
    %c0_i32_0 = arith.constant 0 : i32
    return %arg0, %c0_i32 : i32, i32
  }
  func.func @transform_1(%arg0: i32) -> (i32, i32) {
    %c0_i32 = arith.constant 0 : i32
    %c0_i32_0 = arith.constant 0 : i32
    %c0_i32_1 = arith.constant 0 : i32
    return %c0_i32, %c0_i32_0 : i32, i32
  }
  func.func @transform_2(%arg0: i32) -> (i32, i32) {
    %c0_i32 = arith.constant 0 : i32
    %c0_i32_0 = arith.constant 0 : i32
    return %arg0, %c0_i32 : i32, i32
  }
}

</mosaic_0001>

<llo_original>
// kernel: tpu_custom_call.1
$region0: #{tpu_custom_call.1}
  #allocation0 [shape = 'u32[]', space=smem, size = 0x4, offset = 0x4, fixed_abs, tag = 'smem constant byte address 0x4 - core index']
  #allocation1 [shape = 'u32[144,128]{1,0:T(1,128)}', space=vmem, size = 0x12000, scoped, tag = 'internal scratch']
  %s0 = inlined_call_operand.hbm [shape: f32[2,1024], index: 0, kind: input, shape index: {}]
  %s1 = inlined_call_operand.hbm [shape: bf16[1024,128], index: 1, kind: input, shape index: {}]
  %s2 = inlined_call_operand.hbm [shape: f32[2,128], index: 2, kind: output, shape index: {}]
  %s3 = sld [smem:[#allocation0]]
  $region26: #{tpu_custom_call.1} parent=0
    _
  %s5 = ssub.s32 1, %s3
  %s6 = scalar_select 0, %s5, %s3
  $region1: #{tpu_custom_call.1} parent=0
    #allocation2 [shape = 'u8[8192]{0}', space=vmem, size = 0x2000, scoped, tag = 'input window, operand 0, single buffered']
    #allocation3 [shape = 's32[1]{0}', space=sflag, size = 0x4, scoped, tag = 'scoped memory for tpu_custom_call.1']
    #allocation4 [shape = 's32[1]{0}', space=sflag, size = 0x4, scoped, tag = 'scoped memory for tpu_custom_call.1']
    #allocation5 [shape = 'u8[262144]{0}', space=vmem, size = 0x40000, scoped, tag = 'input window, operand 1, single buffered']
    #allocation6 [shape = 's32[1]{0}', space=sflag, size = 0x4, scoped, tag = 'scoped memory for tpu_custom_call.1']
    #allocation7 [shape = 'u8[1024]{0}', space=vmem, size = 0x400, scoped, tag = 'output window, operand 0, single buffered']
    %7 = vsyncpa [#allocation3], 0
    %8 = vsyncpa [#allocation6], 0
    %9 = vsyncpa [#allocation4], 0
    // Predicated region
    $region2: #{tpu_custom_call.1} parent=1 // pred_check
      _
    $region3: #{tpu_custom_call.1} parent=1 // pred_check_branch
      %11 = sbr.rel (0) target = $region5
    $region4: #{tpu_custom_call.1} parent=1 // pred_region
      %s13 = ssub.s32 256, 256
      %14 = vsyncadd [#allocation3], %s13
      %s16 = sshll.u32 [#allocation2], 4
      %s17 = int_to_ptr.vmem [resolvable:$true] %s16
      %19 = dma.hbm_to_vmem [thread:$0]  %s0, 256, %s17, [#allocation3]
    $region5: #{tpu_custom_call.1} parent=1 // pred_fallthru
      _
    // Predicated region
    $region6: #{tpu_custom_call.1} parent=1 // pred_check
      _
    $region7: #{tpu_custom_call.1} parent=1 // pred_check_branch
      %21 = sbr.rel (0) target = $region9
    $region8: #{tpu_custom_call.1} parent=1 // pred_region
      %s23 = ssub.s32 8192, 8192
      %24 = vsyncadd [#allocation6], %s23
      %s25 = sshll.u32 [#allocation5], 4
      %s26 = int_to_ptr.vmem [resolvable:$true] %s25
      %31 = dma.hbm_to_vmem [thread:$0]  %s1, 8192, %s26, [#allocation6], 64, 64, 4
    $region9: #{tpu_custom_call.1} parent=1 // pred_fallthru
      _
    // Predicated region
    $region10: #{tpu_custom_call.1} parent=1 // pred_check
      _
    $region11: #{tpu_custom_call.1} parent=1 // pred_check_branch
      %33 = sbr.rel (0) target = $region13
    $region12: #{tpu_custom_call.1} parent=1 // pred_region
      %34 = dma.done [#allocation3], 256
    $region13: #{tpu_custom_call.1} parent=1 // pred_fallthru
      _
    // Predicated region
    $region14: #{tpu_custom_call.1} parent=1 // pred_check
      _
    $region15: #{tpu_custom_call.1} parent=1 // pred_check_branch
      %36 = sbr.rel (0) target = $region17
    $region16: #{tpu_custom_call.1} parent=1 // pred_region
      %37 = dma.done [#allocation6], 8192
    $region17: #{tpu_custom_call.1} parent=1 // pred_fallthru
      _
    %v39 = vld [vmem:[#allocation2] sm:$0xff]
    %v40 = vld [vmem:[#allocation2 + $0x8] sm:$0xff]
    %v41 = vmul.f32 %v39, 127.5
    %v42 = vmul.f32 %v40, 127.5
    %v43 = vadd.f32 %v41, 128.0
    %v44 = vadd.f32 %v42, 128.0
    %v45 = vmax.f32 %v43, 0.0
    %v46 = vmax.f32 %v44, 0.0
    %v47 = vmin.f32 %v45, 255.0
    %v48 = vmin.f32 %v46, 255.0
    %v49 = vfloor.f32 %v47
    %v50 = vfloor.f32 %v48
    %v53 = vcombine.high %v49, %v49
    %v55 = vunpack.c.l.s4 1983009808
    %v56 = vunpack.c.0.s8 %v55
    %v57 = vlaneseq
    %v58 = vshrl.u32 %v57, 7
    %v59 = vsub.s32 %v56, %v58
    %v60 = vrot.slane %v49, %v59
    %v62 = vunpack.c.l.s4 1983009808
    %v63 = vunpack.c.0.s8 %v62
    %v64 = vlaneseq
    %v65 = vshrl.u32 %v64, 7
    %v66 = vsub.s32 %v63, %v65
    %v67 = vrot.slane %v53, %v66
    %v68 = vcombine.high %v60, %v60
    %v69 = vcombine.high %v67, %v67
    %v70 = vcombine.high %v50, %v50
    %v72 = vunpack.c.l.s4 1983009808
    %v73 = vunpack.c.0.s8 %v72
    %v74 = vlaneseq
    %v75 = vshrl.u32 %v74, 7
    %v76 = vsub.s32 %v73, %v75
    %v77 = vrot.slane %v50, %v76
    %v79 = vunpack.c.l.s4 1983009808
    %v80 = vunpack.c.0.s8 %v79
    %v81 = vlaneseq
    %v82 = vshrl.u32 %v81, 7
    %v83 = vsub.s32 %v80, %v82
    %v84 = vrot.slane %v70, %v83
    %v85 = vcombine.high %v77, %v77
    %v86 = vcombine.high %v84, %v84
    %v95 = vpack.c.bf16 %v60, %v60
    %v96 = vpack.c.bf16 %v68, %v68
    %v97 = vpack.c.bf16 %v67, %v67
    %v98 = vpack.c.bf16 %v69, %v69
    %v99 = vpack.c.bf16 %v77, %v77
    %v100 = vpack.c.bf16 %v85, %v85
    %v101 = vpack.c.bf16 %v84, %v84
    %v102 = vpack.c.bf16 %v86, %v86
    %v103 = vld [vmem:[#allocation5] sm:$0xf]
    %v104 = vld [vmem:[#allocation5 + $0x4] sm:$0xf]
    %v105 = vld [vmem:[#allocation5 + $0x8] sm:$0xf]
    %v106 = vld [vmem:[#allocation5 + $0xc] sm:$0xf]
    %v107 = vld [vmem:[#allocation5 + $0x10] sm:$0xf]
    %v108 = vld [vmem:[#allocation5 + $0x14] sm:$0xf]
    %v109 = vld [vmem:[#allocation5 + $0x18] sm:$0xf]
    %v110 = vld [vmem:[#allocation5 + $0x1c] sm:$0xf]
    %v111 = vld [vmem:[#allocation5 + $0x20] sm:$0xf]
    %v112 = vld [vmem:[#allocation5 + $0x24] sm:$0xf]
    %v113 = vld [vmem:[#allocation5 + $0x28] sm:$0xf]
    %v114 = vld [vmem:[#allocation5 + $0x2c] sm:$0xf]
    %v115 = vld [vmem:[#allocation5 + $0x30] sm:$0xf]
    %v116 = vld [vmem:[#allocation5 + $0x34] sm:$0xf]
    %v117 = vld [vmem:[#allocation5 + $0x38] sm:$0xf]
    %v118 = vld [vmem:[#allocation5 + $0x3c] sm:$0xf]
    %v119 = vld [vmem:[#allocation5 + $0x40] sm:$0xf]
    %v120 = vld [vmem:[#allocation5 + $0x44] sm:$0xf]
    %v121 = vld [vmem:[#allocation5 + $0x48] sm:$0xf]
    %v122 = vld [vmem:[#allocation5 + $0x4c] sm:$0xf]
    %v123 = vld [vmem:[#allocation5 + $0x50] sm:$0xf]
    %v124 = vld [vmem:[#allocation5 + $0x54] sm:$0xf]
    %v125 = vld [vmem:[#allocation5 + $0x58] sm:$0xf]
    %v126 = vld [vmem:[#allocation5 + $0x5c] sm:$0xf]
    %v127 = vld [vmem:[#allocation5 + $0x60] sm:$0xf]
    %v128 = vld [vmem:[#allocation5 + $0x64] sm:$0xf]
    %v129 = vld [vmem:[#allocation5 + $0x68] sm:$0xf]
    %v130 = vld [vmem:[#allocation5 + $0x6c] sm:$0xf]
    %v131 = vld [vmem:[#allocation5 + $0x70] sm:$0xf]
    %v132 = vld [vmem:[#allocation5 + $0x74] sm:$0xf]
    %v133 = vld [vmem:[#allocation5 + $0x78] sm:$0xf]
    %v134 = vld [vmem:[#allocation5 + $0x7c] sm:$0xf]
    %v135 = vld [vmem:[#allocation5 + $0x80] sm:$0xf]
    %v136 = vld [vmem:[#allocation5 + $0x84] sm:$0xf]
    %v137 = vld [vmem:[#allocation5 + $0x88] sm:$0xf]
    %v138 = vld [vmem:[#allocation5 + $0x8c] sm:$0xf]
    %v139 = vld [vmem:[#allocation5 + $0x90] sm:$0xf]
    %v140 = vld [vmem:[#allocation5 + $0x94] sm:$0xf]
    %v141 = vld [vmem:[#allocation5 + $0x98] sm:$0xf]
    %v142 = vld [vmem:[#allocation5 + $0x9c] sm:$0xf]
    %v143 = vld [vmem:[#allocation5 + $0xa0] sm:$0xf]
    %v144 = vld [vmem:[#allocation5 + $0xa4] sm:$0xf]
    %v145 = vld [vmem:[#allocation5 + $0xa8] sm:$0xf]
    %v146 = vld [vmem:[#allocation5 + $0xac] sm:$0xf]
    %v147 = vld [vmem:[#allocation5 + $0xb0] sm:$0xf]
    %v148 = vld [vmem:[#allocation5 + $0xb4] sm:$0xf]
    %v149 = vld [vmem:[#allocation5 + $0xb8] sm:$0xf]
    %v150 = vld [vmem:[#allocation5 + $0xbc] sm:$0xf]
    %v151 = vld [vmem:[#allocation5 + $0xc0] sm:$0xf]
    %v152 = vld [vmem:[#allocation5 + $0xc4] sm:$0xf]
    %v153 = vld [vmem:[#allocation5 + $0xc8] sm:$0xf]
    %v154 = vld [vmem:[#allocation5 + $0xcc] sm:$0xf]
    %v155 = vld [vmem:[#allocation5 + $0xd0] sm:$0xf]
    %v156 = vld [vmem:[#allocation5 + $0xd4] sm:$0xf]
    %v157 = vld [vmem:[#allocation5 + $0xd8] sm:$0xf]
    %v158 = vld [vmem:[#allocation5 + $0xdc] sm:$0xf]
    %v159 = vld [vmem:[#allocation5 + $0xe0] sm:$0xf]
    %v160 = vld [vmem:[#allocation5 + $0xe4] sm:$0xf]
    %v161 = vld [vmem:[#allocation5 + $0xe8] sm:$0xf]
    %v162 = vld [vmem:[#allocation5 + $0xec] sm:$0xf]
    %v163 = vld [vmem:[#allocation5 + $0xf0] sm:$0xf]
    %v164 = vld [vmem:[#allocation5 + $0xf4] sm:$0xf]
    %v165 = vld [vmem:[#allocation5 + $0xf8] sm:$0xf]
    %v166 = vld [vmem:[#allocation5 + $0xfc] sm:$0xf]
    %v167 = vld [vmem:[#allocation5 + $0x100] sm:$0xf]
    %v168 = vld [vmem:[#allocation5 + $0x104] sm:$0xf]
    %v169 = vld [vmem:[#allocation5 + $0x108] sm:$0xf]
    %v170 = vld [vmem:[#allocation5 + $0x10c] sm:$0xf]
    %v171 = vld [vmem:[#allocation5 + $0x110] sm:$0xf]
    %v172 = vld [vmem:[#allocation5 + $0x114] sm:$0xf]
    %v173 = vld [vmem:[#allocation5 + $0x118] sm:$0xf]
    %v174 = vld [vmem:[#allocation5 + $0x11c] sm:$0xf]
    %v175 = vld [vmem:[#allocation5 + $0x120] sm:$0xf]
    %v176 = vld [vmem:[#allocation5 + $0x124] sm:$0xf]
    %v177 = vld [vmem:[#allocation5 + $0x128] sm:$0xf]
    %v178 = vld [vmem:[#allocation5 + $0x12c] sm:$0xf]
    %v179 = vld [vmem:[#allocation5 + $0x130] sm:$0xf]
    %v180 = vld [vmem:[#allocation5 + $0x134] sm:$0xf]
    %v181 = vld [vmem:[#allocation5 + $0x138] sm:$0xf]
    %v182 = vld [vmem:[#allocation5 + $0x13c] sm:$0xf]
    %v183 = vld [vmem:[#allocation5 + $0x140] sm:$0xf]
    %v184 = vld [vmem:[#allocation5 + $0x144] sm:$0xf]
    %v185 = vld [vmem:[#allocation5 + $0x148] sm:$0xf]
    %v186 = vld [vmem:[#allocation5 + $0x14c] sm:$0xf]
    %v187 = vld [vmem:[#allocation5 + $0x150] sm:$0xf]
    %v188 = vld [vmem:[#allocation5 + $0x154] sm:$0xf]
    %v189 = vld [vmem:[#allocation5 + $0x158] sm:$0xf]
    %v190 = vld [vmem:[#allocation5 + $0x15c] sm:$0xf]
    %v191 = vld [vmem:[#allocation5 + $0x160] sm:$0xf]
    %v192 = vld [vmem:[#allocation5 + $0x164] sm:$0xf]
    %v193 = vld [vmem:[#allocation5 + $0x168] sm:$0xf]
    %v194 = vld [vmem:[#allocation5 + $0x16c] sm:$0xf]
    %v195 = vld [vmem:[#allocation5 + $0x170] sm:$0xf]
    %v196 = vld [vmem:[#allocation5 + $0x174] sm:$0xf]
    %v197 = vld [vmem:[#allocation5 + $0x178] sm:$0xf]
    %v198 = vld [vmem:[#allocation5 + $0x17c] sm:$0xf]
    %v199 = vld [vmem:[#allocation5 + $0x180] sm:$0xf]
    %v200 = vld [vmem:[#allocation5 + $0x184] sm:$0xf]
    %v201 = vld [vmem:[#allocation5 + $0x188] sm:$0xf]
    %v202 = vld [vmem:[#allocation5 + $0x18c] sm:$0xf]
    %v203 = vld [vmem:[#allocation5 + $0x190] sm:$0xf]
    %v204 = vld [vmem:[#allocation5 + $0x194] sm:$0xf]
    %v205 = vld [vmem:[#allocation5 + $0x198] sm:$0xf]
    %v206 = vld [vmem:[#allocation5 + $0x19c] sm:$0xf]
    %v207 = vld [vmem:[#allocation5 + $0x1a0] sm:$0xf]
    %v208 = vld [vmem:[#allocation5 + $0x1a4] sm:$0xf]
    %v209 = vld [vmem:[#allocation5 + $0x1a8] sm:$0xf]
    %v210 = vld [vmem:[#allocation5 + $0x1ac] sm:$0xf]
    %v211 = vld [vmem:[#allocation5 + $0x1b0] sm:$0xf]
    %v212 = vld [vmem:[#allocation5 + $0x1b4] sm:$0xf]
    %v213 = vld [vmem:[#allocation5 + $0x1b8] sm:$0xf]
    %v214 = vld [vmem:[#allocation5 + $0x1bc] sm:$0xf]
    %v215 = vld [vmem:[#allocation5 + $0x1c0] sm:$0xf]
    %v216 = vld [vmem:[#allocation5 + $0x1c4] sm:$0xf]
    %v217 = vld [vmem:[#allocation5 + $0x1c8] sm:$0xf]
    %v218 = vld [vmem:[#allocation5 + $0x1cc] sm:$0xf]
    %v219 = vld [vmem:[#allocation5 + $0x1d0] sm:$0xf]
    %v220 = vld [vmem:[#allocation5 + $0x1d4] sm:$0xf]
    %v221 = vld [vmem:[#allocation5 + $0x1d8] sm:$0xf]
    %v222 = vld [vmem:[#allocation5 + $0x1dc] sm:$0xf]
    %v223 = vld [vmem:[#allocation5 + $0x1e0] sm:$0xf]
    %v224 = vld [vmem:[#allocation5 + $0x1e4] sm:$0xf]
    %v225 = vld [vmem:[#allocation5 + $0x1e8] sm:$0xf]
    %v226 = vld [vmem:[#allocation5 + $0x1ec] sm:$0xf]
    %v227 = vld [vmem:[#allocation5 + $0x1f0] sm:$0xf]
    %v228 = vld [vmem:[#allocation5 + $0x1f4] sm:$0xf]
    %v229 = vld [vmem:[#allocation5 + $0x1f8] sm:$0xf]
    %v230 = vld [vmem:[#allocation5 + $0x1fc] sm:$0xf]
    %v359 = vunpack.c.l.b16 %v103
    %v360 = vunpack.c.l.b16 %v104
    %v361 = vunpack.c.l.b16 %v105
    %v362 = vunpack.c.l.b16 %v106
    %v363 = vunpack.c.l.b16 %v107
    %v364 = vunpack.c.l.b16 %v108
    %v365 = vunpack.c.l.b16 %v109
    %v366 = vunpack.c.l.b16 %v110
    %v367 = vunpack.c.l.b16 %v111
    %v368 = vunpack.c.l.b16 %v112
    %v369 = vunpack.c.l.b16 %v113
    %v370 = vunpack.c.l.b16 %v114
    %v371 = vunpack.c.l.b16 %v115
    %v372 = vunpack.c.l.b16 %v116
    %v373 = vunpack.c.l.b16 %v117
    %v374 = vunpack.c.l.b16 %v118
    %v375 = vunpack.c.l.b16 %v119
    %v376 = vunpack.c.l.b16 %v120
    %v377 = vunpack.c.l.b16 %v121
    %v378 = vunpack.c.l.b16 %v122
    %v379 = vunpack.c.l.b16 %v123
    %v380 = vunpack.c.l.b16 %v124
    %v381 = vunpack.c.l.b16 %v125
    %v382 = vunpack.c.l.b16 %v126
    %v383 = vunpack.c.l.b16 %v127
    %v384 = vunpack.c.l.b16 %v128
    %v385 = vunpack.c.l.b16 %v129
    %v386 = vunpack.c.l.b16 %v130
    %v387 = vunpack.c.l.b16 %v131
    %v388 = vunpack.c.l.b16 %v132
    %v389 = vunpack.c.l.b16 %v133
    %v390 = vunpack.c.l.b16 %v134
    %v391 = vunpack.c.l.b16 %v135
    %v392 = vunpack.c.l.b16 %v136
    %v393 = vunpack.c.l.b16 %v137
    %v394 = vunpack.c.l.b16 %v138
    %v395 = vunpack.c.l.b16 %v139
    %v396 = vunpack.c.l.b16 %v140
    %v397 = vunpack.c.l.b16 %v141
    %v398 = vunpack.c.l.b16 %v142
    %v399 = vunpack.c.l.b16 %v143
    %v400 = vunpack.c.l.b16 %v144
    %v401 = vunpack.c.l.b16 %v145
    %v402 = vunpack.c.l.b16 %v146
    %v403 = vunpack.c.l.b16 %v147
    %v404 = vunpack.c.l.b16 %v148
    %v405 = vunpack.c.l.b16 %v149
    %v406 = vunpack.c.l.b16 %v150
    %v407 = vunpack.c.l.b16 %v151
    %v408 = vunpack.c.l.b16 %v152
    %v409 = vunpack.c.l.b16 %v153
    %v410 = vunpack.c.l.b16 %v154
    %v411 = vunpack.c.l.b16 %v155
    %v412 = vunpack.c.l.b16 %v156
    %v413 = vunpack.c.l.b16 %v157
    %v414 = vunpack.c.l.b16 %v158
    %v415 = vunpack.c.l.b16 %v159
    %v416 = vunpack.c.l.b16 %v160
    %v417 = vunpack.c.l.b16 %v161
    %v418 = vunpack.c.l.b16 %v162
    %v419 = vunpack.c.l.b16 %v163
    %v420 = vunpack.c.l.b16 %v164
    %v421 = vunpack.c.l.b16 %v165
    %v422 = vunpack.c.l.b16 %v166
    %v423 = vunpack.c.l.b16 %v167
    %v424 = vunpack.c.l.b16 %v168
    %v425 = vunpack.c.l.b16 %v169
    %v426 = vunpack.c.l.b16 %v170
    %v427 = vunpack.c.l.b16 %v171
    %v428 = vunpack.c.l.b16 %v172
    %v429 = vunpack.c.l.b16 %v173
    %v430 = vunpack.c.l.b16 %v174
    %v431 = vunpack.c.l.b16 %v175
    %v432 = vunpack.c.l.b16 %v176
    %v433 = vunpack.c.l.b16 %v177
    %v434 = vunpack.c.l.b16 %v178
    %v435 = vunpack.c.l.b16 %v179
    %v436 = vunpack.c.l.b16 %v180
    %v437 = vunpack.c.l.b16 %v181
    %v438 = vunpack.c.l.b16 %v182
    %v439 = vunpack.c.l.b16 %v183
    %v440 = vunpack.c.l.b16 %v184
    %v441 = vunpack.c.l.b16 %v185
    %v442 = vunpack.c.l.b16 %v186
    %v443 = vunpack.c.l.b16 %v187
    %v444 = vunpack.c.l.b16 %v188
    %v445 = vunpack.c.l.b16 %v189
    %v446 = vunpack.c.l.b16 %v190
    %v447 = vunpack.c.l.b16 %v191
    %v448 = vunpack.c.l.b16 %v192
    %v449 = vunpack.c.l.b16 %v193
    %v450 = vunpack.c.l.b16 %v194
    %v451 = vunpack.c.l.b16 %v195
    %v452 = vunpack.c.l.b16 %v196
    %v453 = vunpack.c.l.b16 %v197
    %v454 = vunpack.c.l.b16 %v198
    %v455 = vunpack.c.l.b16 %v199
    %v456 = vunpack.c.l.b16 %v200
    %v457 = vunpack.c.l.b16 %v201
    %v458 = vunpack.c.l.b16 %v202
    %v459 = vunpack.c.l.b16 %v203
    %v460 = vunpack.c.l.b16 %v204
    %v461 = vunpack.c.l.b16 %v205
    %v462 = vunpack.c.l.b16 %v206
    %v463 = vunpack.c.l.b16 %v207
    %v464 = vunpack.c.l.b16 %v208
    %v465 = vunpack.c.l.b16 %v209
    %v466 = vunpack.c.l.b16 %v210
    %v467 = vunpack.c.l.b16 %v211
    %v468 = vunpack.c.l.b16 %v212
    %v469 = vunpack.c.l.b16 %v213
    %v470 = vunpack.c.l.b16 %v214
    %v471 = vunpack.c.l.b16 %v215
    %v472 = vunpack.c.l.b16 %v216
    %v473 = vunpack.c.l.b16 %v217
    %v474 = vunpack.c.l.b16 %v218
    %v475 = vunpack.c.l.b16 %v219
    %v476 = vunpack.c.l.b16 %v220
    %v477 = vunpack.c.l.b16 %v221
    %v478 = vunpack.c.l.b16 %v222
    %v479 = vunpack.c.l.b16 %v223
    %v480 = vunpack.c.l.b16 %v224
    %v481 = vunpack.c.l.b16 %v225
    %v482 = vunpack.c.l.b16 %v226
    %v483 = vunpack.c.l.b16 %v227
    %v484 = vunpack.c.l.b16 %v228
    %v485 = vunpack.c.l.b16 %v229
    %v486 = vunpack.c.l.b16 %v230
    %v487 = vpack.c.b16 %v360, %v359
    %v488 = vpack.c.b16 %v362, %v361
    %v489 = vpack.c.b16 %v364, %v363
    %v490 = vpack.c.b16 %v366, %v365
    %v491 = vpack.c.b16 %v368, %v367
    %v492 = vpack.c.b16 %v370, %v369
    %v493 = vpack.c.b16 %v372, %v371
    %v494 = vpack.c.b16 %v374, %v373
    %v495 = vpack.c.b16 %v376, %v375
    %v496 = vpack.c.b16 %v378, %v377
    %v497 = vpack.c.b16 %v380, %v379
    %v498 = vpack.c.b16 %v382, %v381
    %v499 = vpack.c.b16 %v384, %v383
    %v500 = vpack.c.b16 %v386, %v385
    %v501 = vpack.c.b16 %v388, %v387
    %v502 = vpack.c.b16 %v390, %v389
    %v503 = vpack.c.b16 %v392, %v391
    %v504 = vpack.c.b16 %v394, %v393
    %v505 = vpack.c.b16 %v396, %v395
    %v506 = vpack.c.b16 %v398, %v397
    %v507 = vpack.c.b16 %v400, %v399
    %v508 = vpack.c.b16 %v402, %v401
    %v509 = vpack.c.b16 %v404, %v403
    %v510 = vpack.c.b16 %v406, %v405
    %v511 = vpack.c.b16 %v408, %v407
    %v512 = vpack.c.b16 %v410, %v409
    %v513 = vpack.c.b16 %v412, %v411
    %v514 = vpack.c.b16 %v414, %v413
    %v515 = vpack.c.b16 %v416, %v415
    %v516 = vpack.c.b16 %v418, %v417
    %v517 = vpack.c.b16 %v420, %v419
    %v518 = vpack.c.b16 %v422, %v421
    %v519 = vpack.c.b16 %v424, %v423
    %v520 = vpack.c.b16 %v426, %v425
    %v521 = vpack.c.b16 %v428, %v427
    %v522 = vpack.c.b16 %v430, %v429
    %v523 = vpack.c.b16 %v432, %v431
    %v524 = vpack.c.b16 %v434, %v433
    %v525 = vpack.c.b16 %v436, %v435
    %v526 = vpack.c.b16 %v438, %v437
    %v527 = vpack.c.b16 %v440, %v439
    %v528 = vpack.c.b16 %v442, %v441
    %v529 = vpack.c.b16 %v444, %v443
    %v530 = vpack.c.b16 %v446, %v445
    %v531 = vpack.c.b16 %v448, %v447
    %v532 = vpack.c.b16 %v450, %v449
    %v533 = vpack.c.b16 %v452, %v451
    %v534 = vpack.c.b16 %v454, %v453
    %v535 = vpack.c.b16 %v456, %v455
    %v536 = vpack.c.b16 %v458, %v457
    %v537 = vpack.c.b16 %v460, %v459
    %v538 = vpack.c.b16 %v462, %v461
    %v539 = vpack.c.b16 %v464, %v463
    %v540 = vpack.c.b16 %v466, %v465
    %v541 = vpack.c.b16 %v468, %v467
    %v542 = vpack.c.b16 %v470, %v469
    %v543 = vpack.c.b16 %v472, %v471
    %v544 = vpack.c.b16 %v474, %v473
    %v545 = vpack.c.b16 %v476, %v475
    %v546 = vpack.c.b16 %v478, %v477
    %v547 = vpack.c.b16 %v480, %v479
    %v548 = vpack.c.b16 %v482, %v481
    %v549 = vpack.c.b16 %v484, %v483
    %v550 = vpack.c.b16 %v486, %v485
    %615 = vmatprep.subr.bf16.mxu0 0
    %616 = vmatpush1.bf16.msra.mxu0 %v494
    %617 = vmatprep.subr.bf16.mxu0 0
    %618 = vmatpush1.bf16.msra.mxu0 %v493
    %619 = vmatprep.subr.bf16.mxu0 0
    %620 = vmatpush1.bf16.msra.mxu0 %v492
    %621 = vmatprep.subr.bf16.mxu0 0
    %622 = vmatpush1.bf16.msra.mxu0 %v491
    %623 = vmatprep.subr.bf16.mxu0 0
    %624 = vmatpush1.bf16.msra.mxu0 %v490
    %625 = vmatprep.subr.bf16.mxu0 0
    %626 = vmatpush1.bf16.msra.mxu0 %v489
    %627 = vmatprep.subr.bf16.mxu0 0
    %628 = vmatpush1.bf16.msra.mxu0 %v488
    %629 = vmatprep.subr.bf16.mxu0 0
    %630 = vmatpush1.bf16.msra.mxu0 %v487
    %631 = vmatprep.subr.bf16.mxu0 0
    %632 = vmatpush2.bf16.msra.mxu0 %v502
    %633 = vmatprep.subr.bf16.mxu0 0
    %634 = vmatpush2.bf16.msra.mxu0 %v501
    %635 = vmatprep.subr.bf16.mxu0 0
    %636 = vmatpush2.bf16.msra.mxu0 %v500
    %637 = vmatprep.subr.bf16.mxu0 0
    %638 = vmatpush2.bf16.msra.mxu0 %v499
    %639 = vmatprep.subr.bf16.mxu0 0
    %640 = vmatpush2.bf16.msra.mxu0 %v498
    %641 = vmatprep.subr.bf16.mxu0 0
    %642 = vmatpush2.bf16.msra.mxu0 %v497
    %643 = vmatprep.subr.bf16.mxu0 0
    %644 = vmatpush2.bf16.msra.mxu0 %v496
    %645 = vmatprep.subr.bf16.mxu0 0
    %646 = vmatpush2.bf16.msra.mxu0 %v495
    %647 = vmatprep.mubr.bf16.mxu0 %v96
    %648 = vmatmul.mubr.bf16.gmra.mxu0 %v95
    %v649 = vpop.f32.mrf.mxu0
    %v650 = vadd.f32 0.0, %v649
    %v651 = vpop.f32.mrf.mxu0
    %v652 = vpop.f32.mrf.mxu0
    %v653 = vpop.f32.mrf.mxu0
    %654 = vdwg.mxu0
    %655 = vmatprep.subr.bf16.mxu0 0
    %656 = vmatpush1.bf16.msra.mxu0 %v510
    %657 = vmatprep.subr.bf16.mxu0 0
    %658 = vmatpush1.bf16.msra.mxu0 %v509
    %659 = vmatprep.subr.bf16.mxu0 0
    %660 = vmatpush1.bf16.msra.mxu0 %v508
    %661 = vmatprep.subr.bf16.mxu0 0
    %662 = vmatpush1.bf16.msra.mxu0 %v507
    %663 = vmatprep.subr.bf16.mxu0 0
    %664 = vmatpush1.bf16.msra.mxu0 %v506
    %665 = vmatprep.subr.bf16.mxu0 0
    %666 = vmatpush1.bf16.msra.mxu0 %v505
    %667 = vmatprep.subr.bf16.mxu0 0
    %668 = vmatpush1.bf16.msra.mxu0 %v504
    %669 = vmatprep.subr.bf16.mxu0 0
    %670 = vmatpush1.bf16.msra.mxu0 %v503
    %671 = vmatprep.subr.bf16.mxu0 0
    %672 = vmatpush2.bf16.msra.mxu0 %v518
    %673 = vmatprep.subr.bf16.mxu0 0
    %674 = vmatpush2.bf16.msra.mxu0 %v517
    %675 = vmatprep.subr.bf16.mxu0 0
    %676 = vmatpush2.bf16.msra.mxu0 %v516
    %677 = vmatprep.subr.bf16.mxu0 0
    %678 = vmatpush2.bf16.msra.mxu0 %v515
    %679 = vmatprep.subr.bf16.mxu0 0
    %680 = vmatpush2.bf16.msra.mxu0 %v514
    %681 = vmatprep.subr.bf16.mxu0 0
    %682 = vmatpush2.bf16.msra.mxu0 %v513
    %683 = vmatprep.subr.bf16.mxu0 0
    %684 = vmatpush2.bf16.msra.mxu0 %v512
    %685 = vmatprep.subr.bf16.mxu0 0
    %686 = vmatpush2.bf16.msra.mxu0 %v511
    %687 = vmatprep.mubr.bf16.mxu0 %v98
    %688 = vmatmul.mubr.bf16.gmra.mxu0 %v97
    %v689 = vpop.f32.mrf.mxu0
    %v690 = vadd.f32 %v650, %v689
    %v691 = vpop.f32.mrf.mxu0
    %v692 = vpop.f32.mrf.mxu0
    %v693 = vpop.f32.mrf.mxu0
    %694 = vdwg.mxu0
    %695 = vmatprep.subr.bf16.mxu0 0
    %696 = vmatpush1.bf16.msra.mxu0 %v526
    %697 = vmatprep.subr.bf16.mxu0 0
    %698 = vmatpush1.bf16.msra.mxu0 %v525
    %699 = vmatprep.subr.bf16.mxu0 0
    %700 = vmatpush1.bf16.msra.mxu0 %v524
    %701 = vmatprep.subr.bf16.mxu0 0
    %702 = vmatpush1.bf16.msra.mxu0 %v523
    %703 = vmatprep.subr.bf16.mxu0 0
    %704 = vmatpush1.bf16.msra.mxu0 %v522
    %705 = vmatprep.subr.bf16.mxu0 0
    %706 = vmatpush1.bf16.msra.mxu0 %v521
    %707 = vmatprep.subr.bf16.mxu0 0
    %708 = vmatpush1.bf16.msra.mxu0 %v520
    %709 = vmatprep.subr.bf16.mxu0 0
    %710 = vmatpush1.bf16.msra.mxu0 %v519
    %711 = vmatprep.subr.bf16.mxu0 0
    %712 = vmatpush2.bf16.msra.mxu0 %v534
    %713 = vmatprep.subr.bf16.mxu0 0
    %714 = vmatpush2.bf16.msra.mxu0 %v533
    %715 = vmatprep.subr.bf16.mxu0 0
    %716 = vmatpush2.bf16.msra.mxu0 %v532
    %717 = vmatprep.subr.bf16.mxu0 0
    %718 = vmatpush2.bf16.msra.mxu0 %v531
    %719 = vmatprep.subr.bf16.mxu0 0
    %720 = vmatpush2.bf16.msra.mxu0 %v530
    %721 = vmatprep.subr.bf16.mxu0 0
    %722 = vmatpush2.bf16.msra.mxu0 %v529
    %723 = vmatprep.subr.bf16.mxu0 0
    %724 = vmatpush2.bf16.msra.mxu0 %v528
    %725 = vmatprep.subr.bf16.mxu0 0
    %726 = vmatpush2.bf16.msra.mxu0 %v527
    %727 = vmatprep.mubr.bf16.mxu0 %v100
    %728 = vmatmul.mubr.bf16.gmra.mxu0 %v99
    %v729 = vpop.f32.mrf.mxu0
    %v730 = vadd.f32 %v690, %v729
    %v731 = vpop.f32.mrf.mxu0
    %v732 = vpop.f32.mrf.mxu0
    %v733 = vpop.f32.mrf.mxu0
    %734 = vdwg.mxu0
    %735 = vmatprep.subr.bf16.mxu0 0
    %736 = vmatpush1.bf16.msra.mxu0 %v542
    %737 = vmatprep.subr.bf16.mxu0 0
    %738 = vmatpush1.bf16.msra.mxu0 %v541
    %739 = vmatprep.subr.bf16.mxu0 0
    %740 = vmatpush1.bf16.msra.mxu0 %v540
    %741 = vmatprep.subr.bf16.mxu0 0
    %742 = vmatpush1.bf16.msra.mxu0 %v539
    %743 = vmatprep.subr.bf16.mxu0 0
    %744 = vmatpush1.bf16.msra.mxu0 %v538
    %745 = vmatprep.subr.bf16.mxu0 0
    %746 = vmatpush1.bf16.msra.mxu0 %v537
    %747 = vmatprep.subr.bf16.mxu0 0
    %748 = vmatpush1.bf16.msra.mxu0 %v536
    %749 = vmatprep.subr.bf16.mxu0 0
    %750 = vmatpush1.bf16.msra.mxu0 %v535
    %751 = vmatprep.subr.bf16.mxu0 0
    %752 = vmatpush2.bf16.msra.mxu0 %v550
    %753 = vmatprep.subr.bf16.mxu0 0
    %754 = vmatpush2.bf16.msra.mxu0 %v549
    %755 = vmatprep.subr.bf16.mxu0 0
    %756 = vmatpush2.bf16.msra.mxu0 %v548
    %757 = vmatprep.subr.bf16.mxu0 0
    %758 = vmatpush2.bf16.msra.mxu0 %v547
    %759 = vmatprep.subr.bf16.mxu0 0
    %760 = vmatpush2.bf16.msra.mxu0 %v546
    %761 = vmatprep.subr.bf16.mxu0 0
    %762 = vmatpush2.bf16.msra.mxu0 %v545
    %763 = vmatprep.subr.bf16.mxu0 0
    %764 = vmatpush2.bf16.msra.mxu0 %v544
    %765 = vmatprep.subr.bf16.mxu0 0
    %766 = vmatpush2.bf16.msra.mxu0 %v543
    %767 = vmatprep.mubr.bf16.mxu0 %v102
    %768 = vmatmul.mubr.bf16.gmra.mxu0 %v101
    %v769 = vpop.f32.mrf.mxu0
    %v770 = vadd.f32 %v730, %v769
    %v771 = vpop.f32.mrf.mxu0
    %v772 = vpop.f32.mrf.mxu0
    %v773 = vpop.f32.mrf.mxu0
    %774 = vdwg.mxu0
    %vm775 = vcmp.gt.f32.partialorder %v770, 0.0
    %v776 = vsel %vm775, 1, 0
    %v777 = vcvt.s32.f32 %v776
    %778 = vst [vmem:[#allocation7] sm:$0x3] %v777
    // Predicated region
    $region18: #{tpu_custom_call.1} parent=1 // pred_check
      _
    $region19: #{tpu_custom_call.1} parent=1 // pred_check_branch
      %780 = sbr.rel (0) target = $region21
    $region20: #{tpu_custom_call.1} parent=1 // pred_region
      %s782 = ssub.s32 32, 32
      %783 = vsyncadd [#allocation4], %s782
      %s785 = sshll.u32 [#allocation7], 4
      %s786 = int_to_ptr.vmem [resolvable:$true] %s785
      %788 = dma.vmem_to_hbm [thread:$0]  %s786, 32, %s2, [#allocation4]
    $region21: #{tpu_custom_call.1} parent=1 // pred_fallthru
      _
    // Predicated region
    $region22: #{tpu_custom_call.1} parent=1 // pred_check
      _
    $region23: #{tpu_custom_call.1} parent=1 // pred_check_branch
      %790 = sbr.rel (0) target = $region25
    $region24: #{tpu_custom_call.1} parent=1 // pred_region
      %791 = dma.done [#allocation4], 32
    $region25: #{tpu_custom_call.1} parent=1 // pred_fallthru
      _
    %792 = vsyncpa [#allocation3], 1
    %793 = vsyncpa [#allocation6], 1
    %794 = vsyncpa [#allocation4], 1

</llo_original>
